<compile_context>
chip_gen: v5e
topology: v5e:2x2
jax: 0.10.0
libtpu: 0.0.40
codegen_flags: <defaults>
</compile_context>

<pallas_src>
import functools

import jax
import jax.numpy as jnp
from jax.experimental import pallas as pl
from jax.experimental.pallas import tpu as pltpu

STATE_DIM = 4
HIDDEN = 128
TILE_B = 512  # batch tile: multiple of 8 (sublanes) and 128 (lanes)


def critic_kernel(xt_ref, w1_ref, b1_ref, w2_ref, b2_ref, out_ref):
    # xt_ref : (STATE_DIM, 1, TB)     state, batch along lanes
    # w1_ref : (STATE_DIM, HIDDEN, 1) layer-1 weight columns
    # b1_ref : (HIDDEN, 1)
    # w2_ref : (HIDDEN, 1)
    # b2_ref : (1, 1) scalar in SMEM
    # out_ref: (1, TB)                lane-dense values
    #
    # Layer 1 on the VPU: h[j, b] = b1[j] + sum_k w1[k, j] * x[b, k]
    h = b1_ref[...] + w1_ref[0] * xt_ref[0]      # (H,1)*(1,TB) -> (H,TB)
    for k in range(1, STATE_DIM):                # unrolled, STATE_DIM == 4
        h = h + w1_ref[k] * xt_ref[k]
    h = jnp.maximum(h, 0.0)                      # ReLU
    # Layer 2: VPU multiply + XLU cross-sublane reduce -> lane-dense (1, TB).
    v = jnp.sum(h * w2_ref[...], axis=0, keepdims=True)
    out_ref[...] = (v + b2_ref[0, 0]).astype(out_ref.dtype)


@functools.partial(jax.jit, static_argnames=("tile_b",))
def critic_forward(state, w1, b1, w2, b2, *, tile_b=TILE_B):
    """state: (B, STATE_DIM) -> value: (B, 1), f32."""
    B = state.shape[0]
    nb = pl.cdiv(B, tile_b)
    b_pad = nb * tile_b

    # Layout plumbing (cheap XLA ops, outside the kernel): batch -> lane axis.
    x = state.astype(jnp.float32)
    x_pad = jnp.pad(x, ((0, b_pad - B), (0, 0)))       # (b_pad, STATE_DIM)
    xt = x_pad.T.reshape(STATE_DIM, 1, b_pad)          # (STATE_DIM, 1, b_pad)
    w1_3d = w1.reshape(STATE_DIM, HIDDEN, 1)
    b1_col = b1.reshape(HIDDEN, 1)
    w2_col = w2.reshape(HIDDEN, 1)
    b2_2d = b2.reshape(1, 1)

    out = pl.pallas_call(
        critic_kernel,
        out_shape=jax.ShapeDtypeStruct((1, b_pad), jnp.float32),
        grid=(nb,),
        in_specs=[
            pl.BlockSpec((STATE_DIM, 1, tile_b), lambda i: (0, 0, i)),   # x
            pl.BlockSpec((STATE_DIM, HIDDEN, 1), lambda i: (0, 0, 0)),   # w1
            pl.BlockSpec((HIDDEN, 1), lambda i: (0, 0)),                 # b1
            pl.BlockSpec((HIDDEN, 1), lambda i: (0, 0)),                 # w2
            pl.BlockSpec(memory_space=pltpu.SMEM),                       # b2
        ],
        out_specs=pl.BlockSpec((1, tile_b), lambda i: (0, i)),
        compiler_params=pltpu.CompilerParams(
            dimension_semantics=("parallel",),  # v7x: shard batch over 2 TCs
        ),
    )(xt, w1_3d, b1_col, w2_col, b2_2d)

    return out[0, :B].reshape(B, 1)


def init_params(key):
    """PyTorch nn.Linear default init: U(-1/sqrt(fan_in), +1/sqrt(fan_in)).
    Weights stored as (in_features, out_features)."""
    k1, k2, k3, k4 = jax.random.split(key, 4)
    bound1 = 1.0 / (STATE_DIM ** 0.5)
    bound2 = 1.0 / (HIDDEN ** 0.5)
    w1 = jax.random.uniform(k1, (STATE_DIM, HIDDEN), jnp.float32, -bound1, bound1)
    b1 = jax.random.uniform(k2, (HIDDEN,), jnp.float32, -bound1, bound1)
    w2 = jax.random.uniform(k3, (HIDDEN,), jnp.float32, -bound2, bound2)
    b2 = jax.random.uniform(k4, (), jnp.float32, -bound2, bound2)
    return w1, b1, w2, b2


if __name__ == "__main__":
    key = jax.random.PRNGKey(0)
    pkey, xkey = jax.random.split(key)
    w1, b1, w2, b2 = init_params(pkey)

    # Note: at B=8 the pallas_call launch dominates; in a real A2C loop batch
    # many environment states / timesteps into one call to amortize it.
    batch = 8
    state = jax.random.normal(xkey, (batch, STATE_DIM), jnp.float32)

    value = jax.block_until_ready(critic_forward(state, w1, b1, w2, b2))

    # Pure-JAX reference (exact f32 matmuls so the comparison is meaningful).
    hi = jax.lax.Precision.HIGHEST
    ref_h = jnp.maximum(jnp.dot(state, w1, precision=hi) + b1[None, :], 0.0)
    ref = jnp.dot(ref_h, w2[:, None], precision=hi) + b2

    assert value.shape == (batch, 1)
    assert jnp.allclose(value, ref, atol=1e-5, rtol=1e-5)
    print("KERNEL_OK")
</pallas_src>

<mosaic_0001>
module attributes {stable_mosaic.version = 11 : i64} {
  func.func @critic_kernel(%arg0: i32, %arg1: memref<4x1x512xf32, #tpu.memory_space<vmem>>, %arg2: memref<4x128x1xf32, #tpu.memory_space<vmem>>, %arg3: memref<128x1xf32, #tpu.memory_space<vmem>>, %arg4: memref<128x1xf32, #tpu.memory_space<vmem>>, %arg5: memref<1x1xf32, #tpu.memory_space<smem>>, %arg6: memref<1x512xf32, #tpu.memory_space<vmem>>) attributes {dimension_semantics = [#tpu.dimension_semantics<parallel>], iteration_bounds = array<i64: 1>, scalar_prefetch = 0 : i64, scratch_operands = 0 : i64, tpu.core_type = #tpu.core_type<tc>, window_params = [{transform_indices = @transform_0, window_bounds = array<i64: 4, 1, 512>}, {pipeline_mode = #tpu.pipeline_mode<synchronous>, transform_indices = @transform_1, window_bounds = array<i64: 4, 128, 1>}, {pipeline_mode = #tpu.pipeline_mode<synchronous>, transform_indices = @transform_2, window_bounds = array<i64: 128, 1>}, {pipeline_mode = #tpu.pipeline_mode<synchronous>, transform_indices = @transform_3, window_bounds = array<i64: 128, 1>}, {transform_indices = @transform_4, window_bounds = array<i64: 1, 1>}, {transform_indices = @transform_5, window_bounds = array<i64: 1, 512>}]} {
    %c0 = arith.constant 0 : index
    %c0_0 = arith.constant 0 : index
    %0 = vector.load %arg3[%c0, %c0_0] : memref<128x1xf32, #tpu.memory_space<vmem>>, vector<128x1xf32>
    %c0_1 = arith.constant 0 : index
    %c0_2 = arith.constant 0 : index
    %c0_3 = arith.constant 0 : index
    %1 = vector.load %arg2[%c0_1, %c0_2, %c0_3] : memref<4x128x1xf32, #tpu.memory_space<vmem>>, vector<1x128x1xf32>
    %2 = vector.shape_cast %1 : vector<1x128x1xf32> to vector<128x1xf32>
    %c0_4 = arith.constant 0 : index
    %c0_5 = arith.constant 0 : index
    %c0_6 = arith.constant 0 : index
    %3 = vector.load %arg1[%c0_4, %c0_5, %c0_6] : memref<4x1x512xf32, #tpu.memory_space<vmem>>, vector<1x1x512xf32>
    %4 = vector.shape_cast %3 : vector<1x1x512xf32> to vector<1x512xf32>
    %5 = vector.broadcast %2 : vector<128x1xf32> to vector<128x512xf32>
    %6 = vector.broadcast %4 : vector<1x512xf32> to vector<128x512xf32>
    %7 = arith.mulf %5, %6 : vector<128x512xf32>
    %8 = vector.broadcast %0 : vector<128x1xf32> to vector<128x512xf32>
    %9 = arith.addf %8, %7 : vector<128x512xf32>
    %c1 = arith.constant 1 : index
    %c0_7 = arith.constant 0 : index
    %c0_8 = arith.constant 0 : index
    %10 = vector.load %arg2[%c1, %c0_7, %c0_8] : memref<4x128x1xf32, #tpu.memory_space<vmem>>, vector<1x128x1xf32>
    %11 = vector.shape_cast %10 : vector<1x128x1xf32> to vector<128x1xf32>
    %c1_9 = arith.constant 1 : index
    %c0_10 = arith.constant 0 : index
    %c0_11 = arith.constant 0 : index
    %12 = vector.load %arg1[%c1_9, %c0_10, %c0_11] : memref<4x1x512xf32, #tpu.memory_space<vmem>>, vector<1x1x512xf32>
    %13 = vector.shape_cast %12 : vector<1x1x512xf32> to vector<1x512xf32>
    %14 = vector.broadcast %11 : vector<128x1xf32> to vector<128x512xf32>
    %15 = vector.broadcast %13 : vector<1x512xf32> to vector<128x512xf32>
    %16 = arith.mulf %14, %15 : vector<128x512xf32>
    %17 = arith.addf %9, %16 : vector<128x512xf32>
    %c2 = arith.constant 2 : index
    %c0_12 = arith.constant 0 : index
    %c0_13 = arith.constant 0 : index
    %18 = vector.load %arg2[%c2, %c0_12, %c0_13] : memref<4x128x1xf32, #tpu.memory_space<vmem>>, vector<1x128x1xf32>
    %19 = vector.shape_cast %18 : vector<1x128x1xf32> to vector<128x1xf32>
    %c2_14 = arith.constant 2 : index
    %c0_15 = arith.constant 0 : index
    %c0_16 = arith.constant 0 : index
    %20 = vector.load %arg1[%c2_14, %c0_15, %c0_16] : memref<4x1x512xf32, #tpu.memory_space<vmem>>, vector<1x1x512xf32>
    %21 = vector.shape_cast %20 : vector<1x1x512xf32> to vector<1x512xf32>
    %22 = vector.broadcast %19 : vector<128x1xf32> to vector<128x512xf32>
    %23 = vector.broadcast %21 : vector<1x512xf32> to vector<128x512xf32>
    %24 = arith.mulf %22, %23 : vector<128x512xf32>
    %25 = arith.addf %17, %24 : vector<128x512xf32>
    %c3 = arith.constant 3 : index
    %c0_17 = arith.constant 0 : index
    %c0_18 = arith.constant 0 : index
    %26 = vector.load %arg2[%c3, %c0_17, %c0_18] : memref<4x128x1xf32, #tpu.memory_space<vmem>>, vector<1x128x1xf32>
    %27 = vector.shape_cast %26 : vector<1x128x1xf32> to vector<128x1xf32>
    %c3_19 = arith.constant 3 : index
    %c0_20 = arith.constant 0 : index
    %c0_21 = arith.constant 0 : index
    %28 = vector.load %arg1[%c3_19, %c0_20, %c0_21] : memref<4x1x512xf32, #tpu.memory_space<vmem>>, vector<1x1x512xf32>
    %29 = vector.shape_cast %28 : vector<1x1x512xf32> to vector<1x512xf32>
    %30 = vector.broadcast %27 : vector<128x1xf32> to vector<128x512xf32>
    %31 = vector.broadcast %29 : vector<1x512xf32> to vector<128x512xf32>
    %32 = arith.mulf %30, %31 : vector<128x512xf32>
    %33 = arith.addf %25, %32 : vector<128x512xf32>
    %cst = arith.constant 0.000000e+00 : f32
    %34 = vector.broadcast %cst : f32 to vector<128x512xf32>
    %35 = arith.maximumf %33, %34 : vector<128x512xf32>
    %c0_22 = arith.constant 0 : index
    %c0_23 = arith.constant 0 : index
    %36 = vector.load %arg4[%c0_22, %c0_23] : memref<128x1xf32, #tpu.memory_space<vmem>>, vector<128x1xf32>
    %37 = vector.broadcast %36 : vector<128x1xf32> to vector<128x512xf32>
    %38 = arith.mulf %35, %37 : vector<128x512xf32>
    %cst_24 = arith.constant dense<0.000000e+00> : vector<512xf32>
    %39 = vector.multi_reduction <add>, %38, %cst_24 [0] : vector<128x512xf32> to vector<512xf32>
    %40 = vector.shape_cast %39 : vector<512xf32> to vector<1x512xf32>
    %c0_25 = arith.constant 0 : index
    %c0_26 = arith.constant 0 : index
    %41 = memref.load %arg5[%c0_25, %c0_26] : memref<1x1xf32, #tpu.memory_space<smem>>
    %42 = vector.broadcast %41 : f32 to vector<1x512xf32>
    %43 = arith.addf %40, %42 : vector<1x512xf32>
    %c0_27 = arith.constant 0 : index
    %c0_28 = arith.constant 0 : index
    %44 = vector.load %arg6[%c0_27, %c0_28] : memref<1x512xf32, #tpu.memory_space<vmem>>, vector<1x512xf32>
    tpu.vector_store %arg6[%c0_27, %c0_28], %43 {strides = array<i32>} : memref<1x512xf32, #tpu.memory_space<vmem>>, vector<1x512xf32>,
    return
  }
  func.func @transform_0(%arg0: i32) -> (i32, i32, i32) {
    %c0_i32 = arith.constant 0 : i32
    %c0_i32_0 = arith.constant 0 : i32
    %c0_i32_1 = arith.constant 0 : i32
    return %c0_i32, %c0_i32_0, %arg0 : i32, i32, i32
  }
  func.func @transform_1(%arg0: i32) -> (i32, i32, i32) {
    %c0_i32 = arith.constant 0 : i32
    %c0_i32_0 = arith.constant 0 : i32
    %c0_i32_1 = arith.constant 0 : i32
    %c0_i32_2 = arith.constant 0 : i32
    return %c0_i32, %c0_i32_0, %c0_i32_1 : i32, i32, i32
  }
  func.func @transform_2(%arg0: i32) -> (i32, i32) {
    %c0_i32 = arith.constant 0 : i32
    %c0_i32_0 = arith.constant 0 : i32
    %c0_i32_1 = arith.constant 0 : i32
    return %c0_i32, %c0_i32_0 : i32, i32
  }
  func.func @transform_3(%arg0: i32) -> (i32, i32) {
    %c0_i32 = arith.constant 0 : i32
    %c0_i32_0 = arith.constant 0 : i32
    %c0_i32_1 = arith.constant 0 : i32
    return %c0_i32, %c0_i32_0 : i32, i32
  }
  func.func @transform_4(%arg0: i32) -> (i32, i32) {
    %c0_i32 = arith.constant 0 : i32
    %c0_i32_0 = arith.constant 0 : i32
    %c0_i32_1 = arith.constant 0 : i32
    return %c0_i32, %c0_i32_0 : i32, i32
  }
  func.func @transform_5(%arg0: i32) -> (i32, i32) {
    %c0_i32 = arith.constant 0 : i32
    %c0_i32_0 = arith.constant 0 : i32
    return %c0_i32, %arg0 : i32, i32
  }
}

</mosaic_0001>

<llo_original>
// kernel: critic_forward.1
$region0: #{critic_forward.1}
  #allocation0 [shape = 'u32[]', space=smem, size = 0x4, offset = 0x4, fixed_abs, tag = 'smem constant byte address 0x4 - core index']
  #allocation1 [shape = 'u32[72,128]{1,0:T(1,128)}', space=vmem, size = 0x9000, scoped, tag = 'internal scratch']
  #allocation2 [shape = 'f32[1,1]{1,0:T(1,128)S(6)}', space=smem, size = 0x200, scoped, tag = 'scoped memory for critic_forward.1']
  %s0 = inlined_call_operand.vmem [shape: f32[4,1,512], index: 0, kind: input, shape index: {}]
  %s1 = inlined_call_operand.vmem [shape: f32[4,128,1], index: 1, kind: input, shape index: {}]
  %s2 = inlined_call_operand.vmem [shape: f32[128,1], index: 2, kind: input, shape index: {}]
  %s3 = inlined_call_operand.vmem [shape: f32[128,1], index: 3, kind: input, shape index: {}]
  %s4 = inlined_call_operand.<no memory space> [shape: f32[1,1], index: 4, kind: input, shape index: {}]
  %s5 = inlined_call_operand.vmem [shape: f32[1,512], index: 5, kind: output, shape index: {}]
  %s6 = sld [smem:[#allocation0]]
  $region30: #{critic_forward.1} parent=0
    _
  %s8 = ssub.s32 1, %s6
  %s9 = scalar_select 0, %s8, %s6
  %10 = sst [smem:[#allocation2]] %s4
  // Predicated region
  $region2: #{critic_forward.1} parent=0 // pred_check
    _
  $region3: #{critic_forward.1} parent=0 // pred_check_branch
    %12 = sbr.rel (0) target = $region5
  $region4: #{critic_forward.1} parent=0 // pred_region
    _
  $region5: #{critic_forward.1} parent=0 // pred_fallthru
    _
  // Predicated region
  $region6: #{critic_forward.1} parent=0 // pred_check
    _
  $region7: #{critic_forward.1} parent=0 // pred_check_branch
    %14 = sbr.rel (0) target = $region9
  $region8: #{critic_forward.1} parent=0 // pred_region
    _
  $region9: #{critic_forward.1} parent=0 // pred_fallthru
    _
  // Predicated region
  $region10: #{critic_forward.1} parent=0 // pred_check
    _
  $region11: #{critic_forward.1} parent=0 // pred_check_branch
    %16 = sbr.rel (0) target = $region13
  $region12: #{critic_forward.1} parent=0 // pred_region
    _
  $region13: #{critic_forward.1} parent=0 // pred_fallthru
    _
  // Predicated region
  $region14: #{critic_forward.1} parent=0 // pred_check
    _
  $region15: #{critic_forward.1} parent=0 // pred_check_branch
    %18 = sbr.rel (0) target = $region17
  $region16: #{critic_forward.1} parent=0 // pred_region
    _
  $region17: #{critic_forward.1} parent=0 // pred_fallthru
    _
  // Predicated region
  $region18: #{critic_forward.1} parent=0 // pred_check
    _
  $region19: #{critic_forward.1} parent=0 // pred_check_branch
    %20 = sbr.rel (0) target = $region21
  $region20: #{critic_forward.1} parent=0 // pred_region
    _
  $region21: #{critic_forward.1} parent=0 // pred_fallthru
    _
  %v21 = vld [vmem:[%s2] sm:$0xff]
  %v22 = vld [vmem:[%s2 + $0x8] sm:$0xff]
  %v23 = vld [vmem:[%s2 + $0x10] sm:$0xff]
  %v24 = vld [vmem:[%s2 + $0x18] sm:$0xff]
  %v25 = vld [vmem:[%s2 + $0x20] sm:$0xff]
  %v26 = vld [vmem:[%s2 + $0x28] sm:$0xff]
  %v27 = vld [vmem:[%s2 + $0x30] sm:$0xff]
  %v28 = vld [vmem:[%s2 + $0x38] sm:$0xff]
  %v29 = vld [vmem:[%s2 + $0x40] sm:$0xff]
  %v30 = vld [vmem:[%s2 + $0x48] sm:$0xff]
  %v31 = vld [vmem:[%s2 + $0x50] sm:$0xff]
  %v32 = vld [vmem:[%s2 + $0x58] sm:$0xff]
  %v33 = vld [vmem:[%s2 + $0x60] sm:$0xff]
  %v34 = vld [vmem:[%s2 + $0x68] sm:$0xff]
  %v35 = vld [vmem:[%s2 + $0x70] sm:$0xff]
  %v36 = vld [vmem:[%s2 + $0x78] sm:$0xff]
  %v37 = vld [vmem:[%s1] sm:$0xff]
  %v38 = vld [vmem:[%s1 + $0x8] sm:$0xff]
  %v39 = vld [vmem:[%s1 + $0x10] sm:$0xff]
  %v40 = vld [vmem:[%s1 + $0x18] sm:$0xff]
  %v41 = vld [vmem:[%s1 + $0x20] sm:$0xff]
  %v42 = vld [vmem:[%s1 + $0x28] sm:$0xff]
  %v43 = vld [vmem:[%s1 + $0x30] sm:$0xff]
  %v44 = vld [vmem:[%s1 + $0x38] sm:$0xff]
  %v45 = vld [vmem:[%s1 + $0x40] sm:$0xff]
  %v46 = vld [vmem:[%s1 + $0x48] sm:$0xff]
  %v47 = vld [vmem:[%s1 + $0x50] sm:$0xff]
  %v48 = vld [vmem:[%s1 + $0x58] sm:$0xff]
  %v49 = vld [vmem:[%s1 + $0x60] sm:$0xff]
  %v50 = vld [vmem:[%s1 + $0x68] sm:$0xff]
  %v51 = vld [vmem:[%s1 + $0x70] sm:$0xff]
  %v52 = vld [vmem:[%s1 + $0x78] sm:$0xff]
  %v53 = vld [vmem:[%s0] sm:$0xf]
  %55 = vset.pattern.permute.xlu0 0
  %56 = vperm.xlu0 %55, %v37
  %v57 = vpop.permute.xlu0 %56
  %60 = vset.pattern.permute.xlu0 0
  %61 = vperm.xlu0 %60, %v38
  %v62 = vpop.permute.xlu0 %61
  %65 = vset.pattern.permute.xlu0 0
  %66 = vperm.xlu0 %65, %v39
  %v67 = vpop.permute.xlu0 %66
  %70 = vset.pattern.permute.xlu0 0
  %71 = vperm.xlu0 %70, %v40
  %v72 = vpop.permute.xlu0 %71
  %75 = vset.pattern.permute.xlu0 0
  %76 = vperm.xlu0 %75, %v41
  %v77 = vpop.permute.xlu0 %76
  %80 = vset.pattern.permute.xlu0 0
  %81 = vperm.xlu0 %80, %v42
  %v82 = vpop.permute.xlu0 %81
  %85 = vset.pattern.permute.xlu0 0
  %86 = vperm.xlu0 %85, %v43
  %v87 = vpop.permute.xlu0 %86
  %90 = vset.pattern.permute.xlu0 0
  %91 = vperm.xlu0 %90, %v44
  %v92 = vpop.permute.xlu0 %91
  %95 = vset.pattern.permute.xlu0 0
  %96 = vperm.xlu0 %95, %v45
  %v97 = vpop.permute.xlu0 %96
  %100 = vset.pattern.permute.xlu0 0
  %101 = vperm.xlu0 %100, %v46
  %v102 = vpop.permute.xlu0 %101
  %105 = vset.pattern.permute.xlu0 0
  %106 = vperm.xlu0 %105, %v47
  %v107 = vpop.permute.xlu0 %106
  %110 = vset.pattern.permute.xlu0 0
  %111 = vperm.xlu0 %110, %v48
  %v112 = vpop.permute.xlu0 %111
  %115 = vset.pattern.permute.xlu0 0
  %116 = vperm.xlu0 %115, %v49
  %v117 = vpop.permute.xlu0 %116
  %120 = vset.pattern.permute.xlu0 0
  %121 = vperm.xlu0 %120, %v50
  %v122 = vpop.permute.xlu0 %121
  %125 = vset.pattern.permute.xlu0 0
  %126 = vperm.xlu0 %125, %v51
  %v127 = vpop.permute.xlu0 %126
  %130 = vset.pattern.permute.xlu0 0
  %131 = vperm.xlu0 %130, %v52
  %v132 = vpop.permute.xlu0 %131
  %v135 = vperm.slane %v53, 0
  %v136 = vperm.slane %v53, 1
  %v137 = vperm.slane %v53, 2
  %v138 = vperm.slane %v53, 3
  %v143 = vmul.f32 %v57, %v135
  %v144 = vmul.f32 %v57, %v136
  %v145 = vmul.f32 %v57, %v137
  %v146 = vmul.f32 %v57, %v138
  %v147 = vmul.f32 %v62, %v135
  %v148 = vmul.f32 %v62, %v136
  %v149 = vmul.f32 %v62, %v137
  %v150 = vmul.f32 %v62, %v138
  %v151 = vmul.f32 %v67, %v135
  %v152 = vmul.f32 %v67, %v136
  %v153 = vmul.f32 %v67, %v137
  %v154 = vmul.f32 %v67, %v138
  %v155 = vmul.f32 %v72, %v135
  %v156 = vmul.f32 %v72, %v136
  %v157 = vmul.f32 %v72, %v137
  %v158 = vmul.f32 %v72, %v138
  %v159 = vmul.f32 %v77, %v135
  %v160 = vmul.f32 %v77, %v136
  %v161 = vmul.f32 %v77, %v137
  %v162 = vmul.f32 %v77, %v138
  %v163 = vmul.f32 %v82, %v135
  %v164 = vmul.f32 %v82, %v136
  %v165 = vmul.f32 %v82, %v137
  %v166 = vmul.f32 %v82, %v138
  %v167 = vmul.f32 %v87, %v135
  %v168 = vmul.f32 %v87, %v136
  %v169 = vmul.f32 %v87, %v137
  %v170 = vmul.f32 %v87, %v138
  %v171 = vmul.f32 %v92, %v135
  %v172 = vmul.f32 %v92, %v136
  %v173 = vmul.f32 %v92, %v137
  %v174 = vmul.f32 %v92, %v138
  %v175 = vmul.f32 %v97, %v135
  %v176 = vmul.f32 %v97, %v136
  %v177 = vmul.f32 %v97, %v137
  %v178 = vmul.f32 %v97, %v138
  %v179 = vmul.f32 %v102, %v135
  %v180 = vmul.f32 %v102, %v136
  %v181 = vmul.f32 %v102, %v137
  %v182 = vmul.f32 %v102, %v138
  %v183 = vmul.f32 %v107, %v135
  %v184 = vmul.f32 %v107, %v136
  %v185 = vmul.f32 %v107, %v137
  %v186 = vmul.f32 %v107, %v138
  %v187 = vmul.f32 %v112, %v135
  %v188 = vmul.f32 %v112, %v136
  %v189 = vmul.f32 %v112, %v137
  %v190 = vmul.f32 %v112, %v138
  %v191 = vmul.f32 %v117, %v135
  %v192 = vmul.f32 %v117, %v136
  %v193 = vmul.f32 %v117, %v137
  %v194 = vmul.f32 %v117, %v138
  %v195 = vmul.f32 %v122, %v135
  %v196 = vmul.f32 %v122, %v136
  %v197 = vmul.f32 %v122, %v137
  %v198 = vmul.f32 %v122, %v138
  %v199 = vmul.f32 %v127, %v135
  %v200 = vmul.f32 %v127, %v136
  %v201 = vmul.f32 %v127, %v137
  %v202 = vmul.f32 %v127, %v138
  %v203 = vmul.f32 %v132, %v135
  %v204 = vmul.f32 %v132, %v136
  %v205 = vmul.f32 %v132, %v137
  %v206 = vmul.f32 %v132, %v138
  %208 = vset.pattern.permute.xlu0 0
  %209 = vperm.xlu0 %208, %v21
  %v210 = vpop.permute.xlu0 %209
  %213 = vset.pattern.permute.xlu0 0
  %214 = vperm.xlu0 %213, %v22
  %v215 = vpop.permute.xlu0 %214
  %218 = vset.pattern.permute.xlu0 0
  %219 = vperm.xlu0 %218, %v23
  %v220 = vpop.permute.xlu0 %219
  %223 = vset.pattern.permute.xlu0 0
  %224 = vperm.xlu0 %223, %v24
  %v225 = vpop.permute.xlu0 %224
  %228 = vset.pattern.permute.xlu0 0
  %229 = vperm.xlu0 %228, %v25
  %v230 = vpop.permute.xlu0 %229
  %233 = vset.pattern.permute.xlu0 0
  %234 = vperm.xlu0 %233, %v26
  %v235 = vpop.permute.xlu0 %234
  %238 = vset.pattern.permute.xlu0 0
  %239 = vperm.xlu0 %238, %v27
  %v240 = vpop.permute.xlu0 %239
  %243 = vset.pattern.permute.xlu0 0
  %244 = vperm.xlu0 %243, %v28
  %v245 = vpop.permute.xlu0 %244
  %248 = vset.pattern.permute.xlu0 0
  %249 = vperm.xlu0 %248, %v29
  %v250 = vpop.permute.xlu0 %249
  %253 = vset.pattern.permute.xlu0 0
  %254 = vperm.xlu0 %253, %v30
  %v255 = vpop.permute.xlu0 %254
  %258 = vset.pattern.permute.xlu0 0
  %259 = vperm.xlu0 %258, %v31
  %v260 = vpop.permute.xlu0 %259
  %263 = vset.pattern.permute.xlu0 0
  %264 = vperm.xlu0 %263, %v32
  %v265 = vpop.permute.xlu0 %264
  %268 = vset.pattern.permute.xlu0 0
  %269 = vperm.xlu0 %268, %v33
  %v270 = vpop.permute.xlu0 %269
  %273 = vset.pattern.permute.xlu0 0
  %274 = vperm.xlu0 %273, %v34
  %v275 = vpop.permute.xlu0 %274
  %278 = vset.pattern.permute.xlu0 0
  %279 = vperm.xlu0 %278, %v35
  %v280 = vpop.permute.xlu0 %279
  %283 = vset.pattern.permute.xlu0 0
  %284 = vperm.xlu0 %283, %v36
  %v285 = vpop.permute.xlu0 %284
  %v287 = vadd.f32 %v210, %v143
  %v288 = vadd.f32 %v210, %v144
  %v289 = vadd.f32 %v210, %v145
  %v290 = vadd.f32 %v210, %v146
  %v291 = vadd.f32 %v215, %v147
  %v292 = vadd.f32 %v215, %v148
  %v293 = vadd.f32 %v215, %v149
  %v294 = vadd.f32 %v215, %v150
  %v295 = vadd.f32 %v220, %v151
  %v296 = vadd.f32 %v220, %v152
  %v297 = vadd.f32 %v220, %v153
  %v298 = vadd.f32 %v220, %v154
  %v299 = vadd.f32 %v225, %v155
  %v300 = vadd.f32 %v225, %v156
  %v301 = vadd.f32 %v225, %v157
  %v302 = vadd.f32 %v225, %v158
  %v303 = vadd.f32 %v230, %v159
  %v304 = vadd.f32 %v230, %v160
  %v305 = vadd.f32 %v230, %v161
  %v306 = vadd.f32 %v230, %v162
  %v307 = vadd.f32 %v235, %v163
  %v308 = vadd.f32 %v235, %v164
  %v309 = vadd.f32 %v235, %v165
  %v310 = vadd.f32 %v235, %v166
  %v311 = vadd.f32 %v240, %v167
  %v312 = vadd.f32 %v240, %v168
  %v313 = vadd.f32 %v240, %v169
  %v314 = vadd.f32 %v240, %v170
  %v315 = vadd.f32 %v245, %v171
  %v316 = vadd.f32 %v245, %v172
  %v317 = vadd.f32 %v245, %v173
  %v318 = vadd.f32 %v245, %v174
  %v319 = vadd.f32 %v250, %v175
  %v320 = vadd.f32 %v250, %v176
  %v321 = vadd.f32 %v250, %v177
  %v322 = vadd.f32 %v250, %v178
  %v323 = vadd.f32 %v255, %v179
  %v324 = vadd.f32 %v255, %v180
  %v325 = vadd.f32 %v255, %v181
  %v326 = vadd.f32 %v255, %v182
  %v327 = vadd.f32 %v260, %v183
  %v328 = vadd.f32 %v260, %v184
  %v329 = vadd.f32 %v260, %v185
  %v330 = vadd.f32 %v260, %v186
  %v331 = vadd.f32 %v265, %v187
  %v332 = vadd.f32 %v265, %v188
  %v333 = vadd.f32 %v265, %v189
  %v334 = vadd.f32 %v265, %v190
  %v335 = vadd.f32 %v270, %v191
  %v336 = vadd.f32 %v270, %v192
  %v337 = vadd.f32 %v270, %v193
  %v338 = vadd.f32 %v270, %v194
  %v339 = vadd.f32 %v275, %v195
  %v340 = vadd.f32 %v275, %v196
  %v341 = vadd.f32 %v275, %v197
  %v342 = vadd.f32 %v275, %v198
  %v343 = vadd.f32 %v280, %v199
  %v344 = vadd.f32 %v280, %v200
  %v345 = vadd.f32 %v280, %v201
  %v346 = vadd.f32 %v280, %v202
  %v347 = vadd.f32 %v285, %v203
  %v348 = vadd.f32 %v285, %v204
  %v349 = vadd.f32 %v285, %v205
  %v350 = vadd.f32 %v285, %v206
  %s351 = scalar_lea.vmem %s1, 128
  %v352 = vld [vmem:[%s351] sm:$0xff]
  %v353 = vld [vmem:[%s351 + $0x8] sm:$0xff]
  %v354 = vld [vmem:[%s351 + $0x10] sm:$0xff]
  %v355 = vld [vmem:[%s351 + $0x18] sm:$0xff]
  %v356 = vld [vmem:[%s351 + $0x20] sm:$0xff]
  %v357 = vld [vmem:[%s351 + $0x28] sm:$0xff]
  %v358 = vld [vmem:[%s351 + $0x30] sm:$0xff]
  %v359 = vld [vmem:[%s351 + $0x38] sm:$0xff]
  %v360 = vld [vmem:[%s351 + $0x40] sm:$0xff]
  %v361 = vld [vmem:[%s351 + $0x48] sm:$0xff]
  %v362 = vld [vmem:[%s351 + $0x50] sm:$0xff]
  %v363 = vld [vmem:[%s351 + $0x58] sm:$0xff]
  %v364 = vld [vmem:[%s351 + $0x60] sm:$0xff]
  %v365 = vld [vmem:[%s351 + $0x68] sm:$0xff]
  %v366 = vld [vmem:[%s351 + $0x70] sm:$0xff]
  %v367 = vld [vmem:[%s351 + $0x78] sm:$0xff]
  %s368 = scalar_lea.vmem %s0, 4
  %v369 = vld [vmem:[%s368] sm:$0xf]
  %371 = vset.pattern.permute.xlu0 0
  %372 = vperm.xlu0 %371, %v352
  %v373 = vpop.permute.xlu0 %372
  %376 = vset.pattern.permute.xlu0 0
  %377 = vperm.xlu0 %376, %v353
  %v378 = vpop.permute.xlu0 %377
  %381 = vset.pattern.permute.xlu0 0
  %382 = vperm.xlu0 %381, %v354
  %v383 = vpop.permute.xlu0 %382
  %386 = vset.pattern.permute.xlu0 0
  %387 = vperm.xlu0 %386, %v355
  %v388 = vpop.permute.xlu0 %387
  %391 = vset.pattern.permute.xlu0 0
  %392 = vperm.xlu0 %391, %v356
  %v393 = vpop.permute.xlu0 %392
  %396 = vset.pattern.permute.xlu0 0
  %397 = vperm.xlu0 %396, %v357
  %v398 = vpop.permute.xlu0 %397
  %401 = vset.pattern.permute.xlu0 0
  %402 = vperm.xlu0 %401, %v358
  %v403 = vpop.permute.xlu0 %402
  %406 = vset.pattern.permute.xlu0 0
  %407 = vperm.xlu0 %406, %v359
  %v408 = vpop.permute.xlu0 %407
  %411 = vset.pattern.permute.xlu0 0
  %412 = vperm.xlu0 %411, %v360
  %v413 = vpop.permute.xlu0 %412
  %416 = vset.pattern.permute.xlu0 0
  %417 = vperm.xlu0 %416, %v361
  %v418 = vpop.permute.xlu0 %417
  %421 = vset.pattern.permute.xlu0 0
  %422 = vperm.xlu0 %421, %v362
  %v423 = vpop.permute.xlu0 %422
  %426 = vset.pattern.permute.xlu0 0
  %427 = vperm.xlu0 %426, %v363
  %v428 = vpop.permute.xlu0 %427
  %431 = vset.pattern.permute.xlu0 0
  %432 = vperm.xlu0 %431, %v364
  %v433 = vpop.permute.xlu0 %432
  %436 = vset.pattern.permute.xlu0 0
  %437 = vperm.xlu0 %436, %v365
  %v438 = vpop.permute.xlu0 %437
  %441 = vset.pattern.permute.xlu0 0
  %442 = vperm.xlu0 %441, %v366
  %v443 = vpop.permute.xlu0 %442
  %446 = vset.pattern.permute.xlu0 0
  %447 = vperm.xlu0 %446, %v367
  %v448 = vpop.permute.xlu0 %447
  %v451 = vperm.slane %v369, 0
  %v452 = vperm.slane %v369, 1
  %v453 = vperm.slane %v369, 2
  %v454 = vperm.slane %v369, 3
  %v459 = vmul.f32 %v373, %v451
  %v460 = vmul.f32 %v373, %v452
  %v461 = vmul.f32 %v373, %v453
  %v462 = vmul.f32 %v373, %v454
  %v463 = vmul.f32 %v378, %v451
  %v464 = vmul.f32 %v378, %v452
  %v465 = vmul.f32 %v378, %v453
  %v466 = vmul.f32 %v378, %v454
  %v467 = vmul.f32 %v383, %v451
  %v468 = vmul.f32 %v383, %v452
  %v469 = vmul.f32 %v383, %v453
  %v470 = vmul.f32 %v383, %v454
  %v471 = vmul.f32 %v388, %v451
  %v472 = vmul.f32 %v388, %v452
  %v473 = vmul.f32 %v388, %v453
  %v474 = vmul.f32 %v388, %v454
  %v475 = vmul.f32 %v393, %v451
  %v476 = vmul.f32 %v393, %v452
  %v477 = vmul.f32 %v393, %v453
  %v478 = vmul.f32 %v393, %v454
  %v479 = vmul.f32 %v398, %v451
  %v480 = vmul.f32 %v398, %v452
  %v481 = vmul.f32 %v398, %v453
  %v482 = vmul.f32 %v398, %v454
  %v483 = vmul.f32 %v403, %v451
  %v484 = vmul.f32 %v403, %v452
  %v485 = vmul.f32 %v403, %v453
  %v486 = vmul.f32 %v403, %v454
  %v487 = vmul.f32 %v408, %v451
  %v488 = vmul.f32 %v408, %v452
  %v489 = vmul.f32 %v408, %v453
  %v490 = vmul.f32 %v408, %v454
  %v491 = vmul.f32 %v413, %v451
  %v492 = vmul.f32 %v413, %v452
  %v493 = vmul.f32 %v413, %v453
  %v494 = vmul.f32 %v413, %v454
  %v495 = vmul.f32 %v418, %v451
  %v496 = vmul.f32 %v418, %v452
  %v497 = vmul.f32 %v418, %v453
  %v498 = vmul.f32 %v418, %v454
  %v499 = vmul.f32 %v423, %v451
  %v500 = vmul.f32 %v423, %v452
  %v501 = vmul.f32 %v423, %v453
  %v502 = vmul.f32 %v423, %v454
  %v503 = vmul.f32 %v428, %v451
  %v504 = vmul.f32 %v428, %v452
  %v505 = vmul.f32 %v428, %v453
  %v506 = vmul.f32 %v428, %v454
  %v507 = vmul.f32 %v433, %v451
  %v508 = vmul.f32 %v433, %v452
  %v509 = vmul.f32 %v433, %v453
  %v510 = vmul.f32 %v433, %v454
  %v511 = vmul.f32 %v438, %v451
  %v512 = vmul.f32 %v438, %v452
  %v513 = vmul.f32 %v438, %v453
  %v514 = vmul.f32 %v438, %v454
  %v515 = vmul.f32 %v443, %v451
  %v516 = vmul.f32 %v443, %v452
  %v517 = vmul.f32 %v443, %v453
  %v518 = vmul.f32 %v443, %v454
  %v519 = vmul.f32 %v448, %v451
  %v520 = vmul.f32 %v448, %v452
  %v521 = vmul.f32 %v448, %v453
  %v522 = vmul.f32 %v448, %v454
  %v523 = vadd.f32 %v287, %v459
  %v524 = vadd.f32 %v288, %v460
  %v525 = vadd.f32 %v289, %v461
  %v526 = vadd.f32 %v290, %v462
  %v527 = vadd.f32 %v291, %v463
  %v528 = vadd.f32 %v292, %v464
  %v529 = vadd.f32 %v293, %v465
  %v530 = vadd.f32 %v294, %v466
  %v531 = vadd.f32 %v295, %v467
  %v532 = vadd.f32 %v296, %v468
  %v533 = vadd.f32 %v297, %v469
  %v534 = vadd.f32 %v298, %v470
  %v535 = vadd.f32 %v299, %v471
  %v536 = vadd.f32 %v300, %v472
  %v537 = vadd.f32 %v301, %v473
  %v538 = vadd.f32 %v302, %v474
  %v539 = vadd.f32 %v303, %v475
  %v540 = vadd.f32 %v304, %v476
  %v541 = vadd.f32 %v305, %v477
  %v542 = vadd.f32 %v306, %v478
  %v543 = vadd.f32 %v307, %v479
  %v544 = vadd.f32 %v308, %v480
  %v545 = vadd.f32 %v309, %v481
  %v546 = vadd.f32 %v310, %v482
  %v547 = vadd.f32 %v311, %v483
  %v548 = vadd.f32 %v312, %v484
  %v549 = vadd.f32 %v313, %v485
  %v550 = vadd.f32 %v314, %v486
  %v551 = vadd.f32 %v315, %v487
  %v552 = vadd.f32 %v316, %v488
  %v553 = vadd.f32 %v317, %v489
  %v554 = vadd.f32 %v318, %v490
  %v555 = vadd.f32 %v319, %v491
  %v556 = vadd.f32 %v320, %v492
  %v557 = vadd.f32 %v321, %v493
  %v558 = vadd.f32 %v322, %v494
  %v559 = vadd.f32 %v323, %v495
  %v560 = vadd.f32 %v324, %v496
  %v561 = vadd.f32 %v325, %v497
  %v562 = vadd.f32 %v326, %v498
  %v563 = vadd.f32 %v327, %v499
  %v564 = vadd.f32 %v328, %v500
  %v565 = vadd.f32 %v329, %v501
  %v566 = vadd.f32 %v330, %v502
  %v567 = vadd.f32 %v331, %v503
  %v568 = vadd.f32 %v332, %v504
  %v569 = vadd.f32 %v333, %v505
  %v570 = vadd.f32 %v334, %v506
  %v571 = vadd.f32 %v335, %v507
  %v572 = vadd.f32 %v336, %v508
  %v573 = vadd.f32 %v337, %v509
  %v574 = vadd.f32 %v338, %v510
  %v575 = vadd.f32 %v339, %v511
  %v576 = vadd.f32 %v340, %v512
  %v577 = vadd.f32 %v341, %v513
  %v578 = vadd.f32 %v342, %v514
  %v579 = vadd.f32 %v343, %v515
  %v580 = vadd.f32 %v344, %v516
  %v581 = vadd.f32 %v345, %v517
  %v582 = vadd.f32 %v346, %v518
  %v583 = vadd.f32 %v347, %v519
  %v584 = vadd.f32 %v348, %v520
  %v585 = vadd.f32 %v349, %v521
  %v586 = vadd.f32 %v350, %v522
  %s587 = scalar_lea.vmem %s1, 256
  %v588 = vld [vmem:[%s587] sm:$0xff]
  %v589 = vld [vmem:[%s587 + $0x8] sm:$0xff]
  %v590 = vld [vmem:[%s587 + $0x10] sm:$0xff]
  %v591 = vld [vmem:[%s587 + $0x18] sm:$0xff]
  %v592 = vld [vmem:[%s587 + $0x20] sm:$0xff]
  %v593 = vld [vmem:[%s587 + $0x28] sm:$0xff]
  %v594 = vld [vmem:[%s587 + $0x30] sm:$0xff]
  %v595 = vld [vmem:[%s587 + $0x38] sm:$0xff]
  %v596 = vld [vmem:[%s587 + $0x40] sm:$0xff]
  %v597 = vld [vmem:[%s587 + $0x48] sm:$0xff]
  %v598 = vld [vmem:[%s587 + $0x50] sm:$0xff]
  %v599 = vld [vmem:[%s587 + $0x58] sm:$0xff]
  %v600 = vld [vmem:[%s587 + $0x60] sm:$0xff]
  %v601 = vld [vmem:[%s587 + $0x68] sm:$0xff]
  %v602 = vld [vmem:[%s587 + $0x70] sm:$0xff]
  %v603 = vld [vmem:[%s587 + $0x78] sm:$0xff]
  %s604 = scalar_lea.vmem %s0, 8
  %v605 = vld [vmem:[%s604] sm:$0xf]
  %607 = vset.pattern.permute.xlu0 0
  %608 = vperm.xlu0 %607, %v588
  %v609 = vpop.permute.xlu0 %608
  %612 = vset.pattern.permute.xlu0 0
  %613 = vperm.xlu0 %612, %v589
  %v614 = vpop.permute.xlu0 %613
  %617 = vset.pattern.permute.xlu0 0
  %618 = vperm.xlu0 %617, %v590
  %v619 = vpop.permute.xlu0 %618
  %622 = vset.pattern.permute.xlu0 0
  %623 = vperm.xlu0 %622, %v591
  %v624 = vpop.permute.xlu0 %623
  %627 = vset.pattern.permute.xlu0 0
  %628 = vperm.xlu0 %627, %v592
  %v629 = vpop.permute.xlu0 %628
  %632 = vset.pattern.permute.xlu0 0
  %633 = vperm.xlu0 %632, %v593
  %v634 = vpop.permute.xlu0 %633
  %637 = vset.pattern.permute.xlu0 0
  %638 = vperm.xlu0 %637, %v594
  %v639 = vpop.permute.xlu0 %638
  %642 = vset.pattern.permute.xlu0 0
  %643 = vperm.xlu0 %642, %v595
  %v644 = vpop.permute.xlu0 %643
  %647 = vset.pattern.permute.xlu0 0
  %648 = vperm.xlu0 %647, %v596
  %v649 = vpop.permute.xlu0 %648
  %652 = vset.pattern.permute.xlu0 0
  %653 = vperm.xlu0 %652, %v597
  %v654 = vpop.permute.xlu0 %653
  %657 = vset.pattern.permute.xlu0 0
  %658 = vperm.xlu0 %657, %v598
  %v659 = vpop.permute.xlu0 %658
  %662 = vset.pattern.permute.xlu0 0
  %663 = vperm.xlu0 %662, %v599
  %v664 = vpop.permute.xlu0 %663
  %667 = vset.pattern.permute.xlu0 0
  %668 = vperm.xlu0 %667, %v600
  %v669 = vpop.permute.xlu0 %668
  %672 = vset.pattern.permute.xlu0 0
  %673 = vperm.xlu0 %672, %v601
  %v674 = vpop.permute.xlu0 %673
  %677 = vset.pattern.permute.xlu0 0
  %678 = vperm.xlu0 %677, %v602
  %v679 = vpop.permute.xlu0 %678
  %682 = vset.pattern.permute.xlu0 0
  %683 = vperm.xlu0 %682, %v603
  %v684 = vpop.permute.xlu0 %683
  %v687 = vperm.slane %v605, 0
  %v688 = vperm.slane %v605, 1
  %v689 = vperm.slane %v605, 2
  %v690 = vperm.slane %v605, 3
  %v695 = vmul.f32 %v609, %v687
  %v696 = vmul.f32 %v609, %v688
  %v697 = vmul.f32 %v609, %v689
  %v698 = vmul.f32 %v609, %v690
  %v699 = vmul.f32 %v614, %v687
  %v700 = vmul.f32 %v614, %v688
  %v701 = vmul.f32 %v614, %v689
  %v702 = vmul.f32 %v614, %v690
  %v703 = vmul.f32 %v619, %v687
  %v704 = vmul.f32 %v619, %v688
  %v705 = vmul.f32 %v619, %v689
  %v706 = vmul.f32 %v619, %v690
  %v707 = vmul.f32 %v624, %v687
  %v708 = vmul.f32 %v624, %v688
  %v709 = vmul.f32 %v624, %v689
  %v710 = vmul.f32 %v624, %v690
  %v711 = vmul.f32 %v629, %v687
  %v712 = vmul.f32 %v629, %v688
  %v713 = vmul.f32 %v629, %v689
  %v714 = vmul.f32 %v629, %v690
  %v715 = vmul.f32 %v634, %v687
  %v716 = vmul.f32 %v634, %v688
  %v717 = vmul.f32 %v634, %v689
  %v718 = vmul.f32 %v634, %v690
  %v719 = vmul.f32 %v639, %v687
  %v720 = vmul.f32 %v639, %v688
  %v721 = vmul.f32 %v639, %v689
  %v722 = vmul.f32 %v639, %v690
  %v723 = vmul.f32 %v644, %v687
  %v724 = vmul.f32 %v644, %v688
  %v725 = vmul.f32 %v644, %v689
  %v726 = vmul.f32 %v644, %v690
  %v727 = vmul.f32 %v649, %v687
  %v728 = vmul.f32 %v649, %v688
  %v729 = vmul.f32 %v649, %v689
  %v730 = vmul.f32 %v649, %v690
  %v731 = vmul.f32 %v654, %v687
  %v732 = vmul.f32 %v654, %v688
  %v733 = vmul.f32 %v654, %v689
  %v734 = vmul.f32 %v654, %v690
  %v735 = vmul.f32 %v659, %v687
  %v736 = vmul.f32 %v659, %v688
  %v737 = vmul.f32 %v659, %v689
  %v738 = vmul.f32 %v659, %v690
  %v739 = vmul.f32 %v664, %v687
  %v740 = vmul.f32 %v664, %v688
  %v741 = vmul.f32 %v664, %v689
  %v742 = vmul.f32 %v664, %v690
  %v743 = vmul.f32 %v669, %v687
  %v744 = vmul.f32 %v669, %v688
  %v745 = vmul.f32 %v669, %v689
  %v746 = vmul.f32 %v669, %v690
  %v747 = vmul.f32 %v674, %v687
  %v748 = vmul.f32 %v674, %v688
  %v749 = vmul.f32 %v674, %v689
  %v750 = vmul.f32 %v674, %v690
  %v751 = vmul.f32 %v679, %v687
  %v752 = vmul.f32 %v679, %v688
  %v753 = vmul.f32 %v679, %v689
  %v754 = vmul.f32 %v679, %v690
  %v755 = vmul.f32 %v684, %v687
  %v756 = vmul.f32 %v684, %v688
  %v757 = vmul.f32 %v684, %v689
  %v758 = vmul.f32 %v684, %v690
  %v759 = vadd.f32 %v523, %v695
  %v760 = vadd.f32 %v524, %v696
  %v761 = vadd.f32 %v525, %v697
  %v762 = vadd.f32 %v526, %v698
  %v763 = vadd.f32 %v527, %v699
  %v764 = vadd.f32 %v528, %v700
  %v765 = vadd.f32 %v529, %v701
  %v766 = vadd.f32 %v530, %v702
  %v767 = vadd.f32 %v531, %v703
  %v768 = vadd.f32 %v532, %v704
  %v769 = vadd.f32 %v533, %v705
  %v770 = vadd.f32 %v534, %v706
  %v771 = vadd.f32 %v535, %v707
  %v772 = vadd.f32 %v536, %v708
  %v773 = vadd.f32 %v537, %v709
  %v774 = vadd.f32 %v538, %v710
  %v775 = vadd.f32 %v539, %v711
  %v776 = vadd.f32 %v540, %v712
  %v777 = vadd.f32 %v541, %v713
  %v778 = vadd.f32 %v542, %v714
  %v779 = vadd.f32 %v543, %v715
  %v780 = vadd.f32 %v544, %v716
  %v781 = vadd.f32 %v545, %v717
  %v782 = vadd.f32 %v546, %v718
  %v783 = vadd.f32 %v547, %v719
  %v784 = vadd.f32 %v548, %v720
  %v785 = vadd.f32 %v549, %v721
  %v786 = vadd.f32 %v550, %v722
  %v787 = vadd.f32 %v551, %v723
  %v788 = vadd.f32 %v552, %v724
  %v789 = vadd.f32 %v553, %v725
  %v790 = vadd.f32 %v554, %v726
  %v791 = vadd.f32 %v555, %v727
  %v792 = vadd.f32 %v556, %v728
  %v793 = vadd.f32 %v557, %v729
  %v794 = vadd.f32 %v558, %v730
  %v795 = vadd.f32 %v559, %v731
  %v796 = vadd.f32 %v560, %v732
  %v797 = vadd.f32 %v561, %v733
  %v798 = vadd.f32 %v562, %v734
  %v799 = vadd.f32 %v563, %v735
  %v800 = vadd.f32 %v564, %v736
  %v801 = vadd.f32 %v565, %v737
  %v802 = vadd.f32 %v566, %v738
  %v803 = vadd.f32 %v567, %v739
  %v804 = vadd.f32 %v568, %v740
  %v805 = vadd.f32 %v569, %v741
  %v806 = vadd.f32 %v570, %v742
  %v807 = vadd.f32 %v571, %v743
  %v808 = vadd.f32 %v572, %v744
  %v809 = vadd.f32 %v573, %v745
  %v810 = vadd.f32 %v574, %v746
  %v811 = vadd.f32 %v575, %v747
  %v812 = vadd.f32 %v576, %v748
  %v813 = vadd.f32 %v577, %v749
  %v814 = vadd.f32 %v578, %v750
  %v815 = vadd.f32 %v579, %v751
  %v816 = vadd.f32 %v580, %v752
  %v817 = vadd.f32 %v581, %v753
  %v818 = vadd.f32 %v582, %v754
  %v819 = vadd.f32 %v583, %v755
  %v820 = vadd.f32 %v584, %v756
  %v821 = vadd.f32 %v585, %v757
  %v822 = vadd.f32 %v586, %v758
  %s823 = scalar_lea.vmem %s1, 384
  %v824 = vld [vmem:[%s823] sm:$0xff]
  %v825 = vld [vmem:[%s823 + $0x8] sm:$0xff]
  %v826 = vld [vmem:[%s823 + $0x10] sm:$0xff]
  %v827 = vld [vmem:[%s823 + $0x18] sm:$0xff]
  %v828 = vld [vmem:[%s823 + $0x20] sm:$0xff]
  %v829 = vld [vmem:[%s823 + $0x28] sm:$0xff]
  %v830 = vld [vmem:[%s823 + $0x30] sm:$0xff]
  %v831 = vld [vmem:[%s823 + $0x38] sm:$0xff]
  %v832 = vld [vmem:[%s823 + $0x40] sm:$0xff]
  %v833 = vld [vmem:[%s823 + $0x48] sm:$0xff]
  %v834 = vld [vmem:[%s823 + $0x50] sm:$0xff]
  %v835 = vld [vmem:[%s823 + $0x58] sm:$0xff]
  %v836 = vld [vmem:[%s823 + $0x60] sm:$0xff]
  %v837 = vld [vmem:[%s823 + $0x68] sm:$0xff]
  %v838 = vld [vmem:[%s823 + $0x70] sm:$0xff]
  %v839 = vld [vmem:[%s823 + $0x78] sm:$0xff]
  %s840 = scalar_lea.vmem %s0, 12
  %v841 = vld [vmem:[%s840] sm:$0xf]
  %843 = vset.pattern.permute.xlu0 0
  %844 = vperm.xlu0 %843, %v824
  %v845 = vpop.permute.xlu0 %844
  %848 = vset.pattern.permute.xlu0 0
  %849 = vperm.xlu0 %848, %v825
  %v850 = vpop.permute.xlu0 %849
  %853 = vset.pattern.permute.xlu0 0
  %854 = vperm.xlu0 %853, %v826
  %v855 = vpop.permute.xlu0 %854
  %858 = vset.pattern.permute.xlu0 0
  %859 = vperm.xlu0 %858, %v827
  %v860 = vpop.permute.xlu0 %859
  %863 = vset.pattern.permute.xlu0 0
  %864 = vperm.xlu0 %863, %v828
  %v865 = vpop.permute.xlu0 %864
  %868 = vset.pattern.permute.xlu0 0
  %869 = vperm.xlu0 %868, %v829
  %v870 = vpop.permute.xlu0 %869
  %873 = vset.pattern.permute.xlu0 0
  %874 = vperm.xlu0 %873, %v830
  %v875 = vpop.permute.xlu0 %874
  %878 = vset.pattern.permute.xlu0 0
  %879 = vperm.xlu0 %878, %v831
  %v880 = vpop.permute.xlu0 %879
  %883 = vset.pattern.permute.xlu0 0
  %884 = vperm.xlu0 %883, %v832
  %v885 = vpop.permute.xlu0 %884
  %888 = vset.pattern.permute.xlu0 0
  %889 = vperm.xlu0 %888, %v833
  %v890 = vpop.permute.xlu0 %889
  %893 = vset.pattern.permute.xlu0 0
  %894 = vperm.xlu0 %893, %v834
  %v895 = vpop.permute.xlu0 %894
  %898 = vset.pattern.permute.xlu0 0
  %899 = vperm.xlu0 %898, %v835
  %v900 = vpop.permute.xlu0 %899
  %903 = vset.pattern.permute.xlu0 0
  %904 = vperm.xlu0 %903, %v836
  %v905 = vpop.permute.xlu0 %904
  %908 = vset.pattern.permute.xlu0 0
  %909 = vperm.xlu0 %908, %v837
  %v910 = vpop.permute.xlu0 %909
  %913 = vset.pattern.permute.xlu0 0
  %914 = vperm.xlu0 %913, %v838
  %v915 = vpop.permute.xlu0 %914
  %918 = vset.pattern.permute.xlu0 0
  %919 = vperm.xlu0 %918, %v839
  %v920 = vpop.permute.xlu0 %919
  %v923 = vperm.slane %v841, 0
  %v924 = vperm.slane %v841, 1
  %v925 = vperm.slane %v841, 2
  %v926 = vperm.slane %v841, 3
  %v931 = vmul.f32 %v845, %v923
  %v932 = vmul.f32 %v845, %v924
  %v933 = vmul.f32 %v845, %v925
  %v934 = vmul.f32 %v845, %v926
  %v935 = vmul.f32 %v850, %v923
  %v936 = vmul.f32 %v850, %v924
  %v937 = vmul.f32 %v850, %v925
  %v938 = vmul.f32 %v850, %v926
  %v939 = vmul.f32 %v855, %v923
  %v940 = vmul.f32 %v855, %v924
  %v941 = vmul.f32 %v855, %v925
  %v942 = vmul.f32 %v855, %v926
  %v943 = vmul.f32 %v860, %v923
  %v944 = vmul.f32 %v860, %v924
  %v945 = vmul.f32 %v860, %v925
  %v946 = vmul.f32 %v860, %v926
  %v947 = vmul.f32 %v865, %v923
  %v948 = vmul.f32 %v865, %v924
  %v949 = vmul.f32 %v865, %v925
  %v950 = vmul.f32 %v865, %v926
  %v951 = vmul.f32 %v870, %v923
  %v952 = vmul.f32 %v870, %v924
  %v953 = vmul.f32 %v870, %v925
  %v954 = vmul.f32 %v870, %v926
  %v955 = vmul.f32 %v875, %v923
  %v956 = vmul.f32 %v875, %v924
  %v957 = vmul.f32 %v875, %v925
  %v958 = vmul.f32 %v875, %v926
  %v959 = vmul.f32 %v880, %v923
  %v960 = vmul.f32 %v880, %v924
  %v961 = vmul.f32 %v880, %v925
  %v962 = vmul.f32 %v880, %v926
  %v963 = vmul.f32 %v885, %v923
  %v964 = vmul.f32 %v885, %v924
  %v965 = vmul.f32 %v885, %v925
  %v966 = vmul.f32 %v885, %v926
  %v967 = vmul.f32 %v890, %v923
  %v968 = vmul.f32 %v890, %v924
  %v969 = vmul.f32 %v890, %v925
  %v970 = vmul.f32 %v890, %v926
  %v971 = vmul.f32 %v895, %v923
  %v972 = vmul.f32 %v895, %v924
  %v973 = vmul.f32 %v895, %v925
  %v974 = vmul.f32 %v895, %v926
  %v975 = vmul.f32 %v900, %v923
  %v976 = vmul.f32 %v900, %v924
  %v977 = vmul.f32 %v900, %v925
  %v978 = vmul.f32 %v900, %v926
  %v979 = vmul.f32 %v905, %v923
  %v980 = vmul.f32 %v905, %v924
  %v981 = vmul.f32 %v905, %v925
  %v982 = vmul.f32 %v905, %v926
  %v983 = vmul.f32 %v910, %v923
  %v984 = vmul.f32 %v910, %v924
  %v985 = vmul.f32 %v910, %v925
  %v986 = vmul.f32 %v910, %v926
  %v987 = vmul.f32 %v915, %v923
  %v988 = vmul.f32 %v915, %v924
  %v989 = vmul.f32 %v915, %v925
  %v990 = vmul.f32 %v915, %v926
  %v991 = vmul.f32 %v920, %v923
  %v992 = vmul.f32 %v920, %v924
  %v993 = vmul.f32 %v920, %v925
  %v994 = vmul.f32 %v920, %v926
  %v995 = vadd.f32 %v759, %v931
  %v996 = vadd.f32 %v760, %v932
  %v997 = vadd.f32 %v761, %v933
  %v998 = vadd.f32 %v762, %v934
  %v999 = vadd.f32 %v763, %v935
  %v1000 = vadd.f32 %v764, %v936
  %v1001 = vadd.f32 %v765, %v937
  %v1002 = vadd.f32 %v766, %v938
  %v1003 = vadd.f32 %v767, %v939
  %v1004 = vadd.f32 %v768, %v940
  %v1005 = vadd.f32 %v769, %v941
  %v1006 = vadd.f32 %v770, %v942
  %v1007 = vadd.f32 %v771, %v943
  %v1008 = vadd.f32 %v772, %v944
  %v1009 = vadd.f32 %v773, %v945
  %v1010 = vadd.f32 %v774, %v946
  %v1011 = vadd.f32 %v775, %v947
  %v1012 = vadd.f32 %v776, %v948
  %v1013 = vadd.f32 %v777, %v949
  %v1014 = vadd.f32 %v778, %v950
  %v1015 = vadd.f32 %v779, %v951
  %v1016 = vadd.f32 %v780, %v952
  %v1017 = vadd.f32 %v781, %v953
  %v1018 = vadd.f32 %v782, %v954
  %v1019 = vadd.f32 %v783, %v955
  %v1020 = vadd.f32 %v784, %v956
  %v1021 = vadd.f32 %v785, %v957
  %v1022 = vadd.f32 %v786, %v958
  %v1023 = vadd.f32 %v787, %v959
  %v1024 = vadd.f32 %v788, %v960
  %v1025 = vadd.f32 %v789, %v961
  %v1026 = vadd.f32 %v790, %v962
  %v1027 = vadd.f32 %v791, %v963
  %v1028 = vadd.f32 %v792, %v964
  %v1029 = vadd.f32 %v793, %v965
  %v1030 = vadd.f32 %v794, %v966
  %v1031 = vadd.f32 %v795, %v967
  %v1032 = vadd.f32 %v796, %v968
  %v1033 = vadd.f32 %v797, %v969
  %v1034 = vadd.f32 %v798, %v970
  %v1035 = vadd.f32 %v799, %v971
  %v1036 = vadd.f32 %v800, %v972
  %v1037 = vadd.f32 %v801, %v973
  %v1038 = vadd.f32 %v802, %v974
  %v1039 = vadd.f32 %v803, %v975
  %v1040 = vadd.f32 %v804, %v976
  %v1041 = vadd.f32 %v805, %v977
  %v1042 = vadd.f32 %v806, %v978
  %v1043 = vadd.f32 %v807, %v979
  %v1044 = vadd.f32 %v808, %v980
  %v1045 = vadd.f32 %v809, %v981
  %v1046 = vadd.f32 %v810, %v982
  %v1047 = vadd.f32 %v811, %v983
  %v1048 = vadd.f32 %v812, %v984
  %v1049 = vadd.f32 %v813, %v985
  %v1050 = vadd.f32 %v814, %v986
  %v1051 = vadd.f32 %v815, %v987
  %v1052 = vadd.f32 %v816, %v988
  %v1053 = vadd.f32 %v817, %v989
  %v1054 = vadd.f32 %v818, %v990
  %v1055 = vadd.f32 %v819, %v991
  %v1056 = vadd.f32 %v820, %v992
  %v1057 = vadd.f32 %v821, %v993
  %v1058 = vadd.f32 %v822, %v994
  %v1059 = vmax.f32 %v995, 0.0
  %v1060 = vmax.f32 %v996, 0.0
  %v1061 = vmax.f32 %v997, 0.0
  %v1062 = vmax.f32 %v998, 0.0
  %v1063 = vmax.f32 %v999, 0.0
  %v1064 = vmax.f32 %v1000, 0.0
  %v1065 = vmax.f32 %v1001, 0.0
  %v1066 = vmax.f32 %v1002, 0.0
  %v1067 = vmax.f32 %v1003, 0.0
  %v1068 = vmax.f32 %v1004, 0.0
  %v1069 = vmax.f32 %v1005, 0.0
  %v1070 = vmax.f32 %v1006, 0.0
  %v1071 = vmax.f32 %v1007, 0.0
  %v1072 = vmax.f32 %v1008, 0.0
  %v1073 = vmax.f32 %v1009, 0.0
  %v1074 = vmax.f32 %v1010, 0.0
  %v1075 = vmax.f32 %v1011, 0.0
  %v1076 = vmax.f32 %v1012, 0.0
  %v1077 = vmax.f32 %v1013, 0.0
  %v1078 = vmax.f32 %v1014, 0.0
  %v1079 = vmax.f32 %v1015, 0.0
  %v1080 = vmax.f32 %v1016, 0.0
  %v1081 = vmax.f32 %v1017, 0.0
  %v1082 = vmax.f32 %v1018, 0.0
  %v1083 = vmax.f32 %v1019, 0.0
  %v1084 = vmax.f32 %v1020, 0.0
  %v1085 = vmax.f32 %v1021, 0.0
  %v1086 = vmax.f32 %v1022, 0.0
  %v1087 = vmax.f32 %v1023, 0.0
  %v1088 = vmax.f32 %v1024, 0.0
  %v1089 = vmax.f32 %v1025, 0.0
  %v1090 = vmax.f32 %v1026, 0.0
  %v1091 = vmax.f32 %v1027, 0.0
  %v1092 = vmax.f32 %v1028, 0.0
  %v1093 = vmax.f32 %v1029, 0.0
  %v1094 = vmax.f32 %v1030, 0.0
  %v1095 = vmax.f32 %v1031, 0.0
  %v1096 = vmax.f32 %v1032, 0.0
  %v1097 = vmax.f32 %v1033, 0.0
  %v1098 = vmax.f32 %v1034, 0.0
  %v1099 = vmax.f32 %v1035, 0.0
  %v1100 = vmax.f32 %v1036, 0.0
  %v1101 = vmax.f32 %v1037, 0.0
  %v1102 = vmax.f32 %v1038, 0.0
  %v1103 = vmax.f32 %v1039, 0.0
  %v1104 = vmax.f32 %v1040, 0.0
  %v1105 = vmax.f32 %v1041, 0.0
  %v1106 = vmax.f32 %v1042, 0.0
  %v1107 = vmax.f32 %v1043, 0.0
  %v1108 = vmax.f32 %v1044, 0.0
  %v1109 = vmax.f32 %v1045, 0.0
  %v1110 = vmax.f32 %v1046, 0.0
  %v1111 = vmax.f32 %v1047, 0.0
  %v1112 = vmax.f32 %v1048, 0.0
  %v1113 = vmax.f32 %v1049, 0.0
  %v1114 = vmax.f32 %v1050, 0.0
  %v1115 = vmax.f32 %v1051, 0.0
  %v1116 = vmax.f32 %v1052, 0.0
  %v1117 = vmax.f32 %v1053, 0.0
  %v1118 = vmax.f32 %v1054, 0.0
  %v1119 = vmax.f32 %v1055, 0.0
  %v1120 = vmax.f32 %v1056, 0.0
  %v1121 = vmax.f32 %v1057, 0.0
  %v1122 = vmax.f32 %v1058, 0.0
  %v1123 = vld [vmem:[%s3] sm:$0xff]
  %v1124 = vld [vmem:[%s3 + $0x8] sm:$0xff]
  %v1125 = vld [vmem:[%s3 + $0x10] sm:$0xff]
  %v1126 = vld [vmem:[%s3 + $0x18] sm:$0xff]
  %v1127 = vld [vmem:[%s3 + $0x20] sm:$0xff]
  %v1128 = vld [vmem:[%s3 + $0x28] sm:$0xff]
  %v1129 = vld [vmem:[%s3 + $0x30] sm:$0xff]
  %v1130 = vld [vmem:[%s3 + $0x38] sm:$0xff]
  %v1131 = vld [vmem:[%s3 + $0x40] sm:$0xff]
  %v1132 = vld [vmem:[%s3 + $0x48] sm:$0xff]
  %v1133 = vld [vmem:[%s3 + $0x50] sm:$0xff]
  %v1134 = vld [vmem:[%s3 + $0x58] sm:$0xff]
  %v1135 = vld [vmem:[%s3 + $0x60] sm:$0xff]
  %v1136 = vld [vmem:[%s3 + $0x68] sm:$0xff]
  %v1137 = vld [vmem:[%s3 + $0x70] sm:$0xff]
  %v1138 = vld [vmem:[%s3 + $0x78] sm:$0xff]
  %1140 = vset.pattern.permute.xlu0 0
  %1141 = vperm.xlu0 %1140, %v1123
  %v1142 = vpop.permute.xlu0 %1141
  %1145 = vset.pattern.permute.xlu0 0
  %1146 = vperm.xlu0 %1145, %v1124
  %v1147 = vpop.permute.xlu0 %1146
  %1150 = vset.pattern.permute.xlu0 0
  %1151 = vperm.xlu0 %1150, %v1125
  %v1152 = vpop.permute.xlu0 %1151
  %1155 = vset.pattern.permute.xlu0 0
  %1156 = vperm.xlu0 %1155, %v1126
  %v1157 = vpop.permute.xlu0 %1156
  %1160 = vset.pattern.permute.xlu0 0
  %1161 = vperm.xlu0 %1160, %v1127
  %v1162 = vpop.permute.xlu0 %1161
  %1165 = vset.pattern.permute.xlu0 0
  %1166 = vperm.xlu0 %1165, %v1128
  %v1167 = vpop.permute.xlu0 %1166
  %1170 = vset.pattern.permute.xlu0 0
  %1171 = vperm.xlu0 %1170, %v1129
  %v1172 = vpop.permute.xlu0 %1171
  %1175 = vset.pattern.permute.xlu0 0
  %1176 = vperm.xlu0 %1175, %v1130
  %v1177 = vpop.permute.xlu0 %1176
  %1180 = vset.pattern.permute.xlu0 0
  %1181 = vperm.xlu0 %1180, %v1131
  %v1182 = vpop.permute.xlu0 %1181
  %1185 = vset.pattern.permute.xlu0 0
  %1186 = vperm.xlu0 %1185, %v1132
  %v1187 = vpop.permute.xlu0 %1186
  %1190 = vset.pattern.permute.xlu0 0
  %1191 = vperm.xlu0 %1190, %v1133
  %v1192 = vpop.permute.xlu0 %1191
  %1195 = vset.pattern.permute.xlu0 0
  %1196 = vperm.xlu0 %1195, %v1134
  %v1197 = vpop.permute.xlu0 %1196
  %1200 = vset.pattern.permute.xlu0 0
  %1201 = vperm.xlu0 %1200, %v1135
  %v1202 = vpop.permute.xlu0 %1201
  %1205 = vset.pattern.permute.xlu0 0
  %1206 = vperm.xlu0 %1205, %v1136
  %v1207 = vpop.permute.xlu0 %1206
  %1210 = vset.pattern.permute.xlu0 0
  %1211 = vperm.xlu0 %1210, %v1137
  %v1212 = vpop.permute.xlu0 %1211
  %1215 = vset.pattern.permute.xlu0 0
  %1216 = vperm.xlu0 %1215, %v1138
  %v1217 = vpop.permute.xlu0 %1216
  %v1219 = vmul.f32 %v1059, %v1142
  %v1220 = vmul.f32 %v1060, %v1142
  %v1221 = vmul.f32 %v1061, %v1142
  %v1222 = vmul.f32 %v1062, %v1142
  %v1223 = vmul.f32 %v1063, %v1147
  %v1224 = vmul.f32 %v1064, %v1147
  %v1225 = vmul.f32 %v1065, %v1147
  %v1226 = vmul.f32 %v1066, %v1147
  %v1227 = vmul.f32 %v1067, %v1152
  %v1228 = vmul.f32 %v1068, %v1152
  %v1229 = vmul.f32 %v1069, %v1152
  %v1230 = vmul.f32 %v1070, %v1152
  %v1231 = vmul.f32 %v1071, %v1157
  %v1232 = vmul.f32 %v1072, %v1157
  %v1233 = vmul.f32 %v1073, %v1157
  %v1234 = vmul.f32 %v1074, %v1157
  %v1235 = vmul.f32 %v1075, %v1162
  %v1236 = vmul.f32 %v1076, %v1162
  %v1237 = vmul.f32 %v1077, %v1162
  %v1238 = vmul.f32 %v1078, %v1162
  %v1239 = vmul.f32 %v1079, %v1167
  %v1240 = vmul.f32 %v1080, %v1167
  %v1241 = vmul.f32 %v1081, %v1167
  %v1242 = vmul.f32 %v1082, %v1167
  %v1243 = vmul.f32 %v1083, %v1172
  %v1244 = vmul.f32 %v1084, %v1172
  %v1245 = vmul.f32 %v1085, %v1172
  %v1246 = vmul.f32 %v1086, %v1172
  %v1247 = vmul.f32 %v1087, %v1177
  %v1248 = vmul.f32 %v1088, %v1177
  %v1249 = vmul.f32 %v1089, %v1177
  %v1250 = vmul.f32 %v1090, %v1177
  %v1251 = vmul.f32 %v1091, %v1182
  %v1252 = vmul.f32 %v1092, %v1182
  %v1253 = vmul.f32 %v1093, %v1182
  %v1254 = vmul.f32 %v1094, %v1182
  %v1255 = vmul.f32 %v1095, %v1187
  %v1256 = vmul.f32 %v1096, %v1187
  %v1257 = vmul.f32 %v1097, %v1187
  %v1258 = vmul.f32 %v1098, %v1187
  %v1259 = vmul.f32 %v1099, %v1192
  %v1260 = vmul.f32 %v1100, %v1192
  %v1261 = vmul.f32 %v1101, %v1192
  %v1262 = vmul.f32 %v1102, %v1192
  %v1263 = vmul.f32 %v1103, %v1197
  %v1264 = vmul.f32 %v1104, %v1197
  %v1265 = vmul.f32 %v1105, %v1197
  %v1266 = vmul.f32 %v1106, %v1197
  %v1267 = vmul.f32 %v1107, %v1202
  %v1268 = vmul.f32 %v1108, %v1202
  %v1269 = vmul.f32 %v1109, %v1202
  %v1270 = vmul.f32 %v1110, %v1202
  %v1271 = vmul.f32 %v1111, %v1207
  %v1272 = vmul.f32 %v1112, %v1207
  %v1273 = vmul.f32 %v1113, %v1207
  %v1274 = vmul.f32 %v1114, %v1207
  %v1275 = vmul.f32 %v1115, %v1212
  %v1276 = vmul.f32 %v1116, %v1212
  %v1277 = vmul.f32 %v1117, %v1212
  %v1278 = vmul.f32 %v1118, %v1212
  %v1279 = vmul.f32 %v1119, %v1217
  %v1280 = vmul.f32 %v1120, %v1217
  %v1281 = vmul.f32 %v1121, %v1217
  %v1282 = vmul.f32 %v1122, %v1217
  %v1283 = vadd.f32 %v1219, %v1223
  %v1284 = vadd.f32 %v1283, %v1227
  %v1285 = vadd.f32 %v1284, %v1231
  %v1286 = vadd.f32 %v1285, %v1235
  %v1287 = vadd.f32 %v1286, %v1239
  %v1288 = vadd.f32 %v1287, %v1243
  %v1289 = vadd.f32 %v1288, %v1247
  %v1290 = vadd.f32 %v1289, %v1251
  %v1291 = vadd.f32 %v1290, %v1255
  %v1292 = vadd.f32 %v1291, %v1259
  %v1293 = vadd.f32 %v1292, %v1263
  %v1294 = vadd.f32 %v1293, %v1267
  %v1295 = vadd.f32 %v1294, %v1271
  %v1296 = vadd.f32 %v1295, %v1275
  %v1297 = vadd.f32 %v1296, %v1279
  %v1298 = vrot.slane %v1297, 4
  %v1299 = vadd.f32 %v1297, %v1298
  %v1300 = vrot.slane %v1299, 2
  %v1301 = vadd.f32 %v1299, %v1300
  %v1302 = vrot.slane %v1301, 1
  %v1303 = vadd.f32 %v1301, %v1302
  %v1304 = vadd.f32 %v1220, %v1224
  %v1305 = vadd.f32 %v1304, %v1228
  %v1306 = vadd.f32 %v1305, %v1232
  %v1307 = vadd.f32 %v1306, %v1236
  %v1308 = vadd.f32 %v1307, %v1240
  %v1309 = vadd.f32 %v1308, %v1244
  %v1310 = vadd.f32 %v1309, %v1248
  %v1311 = vadd.f32 %v1310, %v1252
  %v1312 = vadd.f32 %v1311, %v1256
  %v1313 = vadd.f32 %v1312, %v1260
  %v1314 = vadd.f32 %v1313, %v1264
  %v1315 = vadd.f32 %v1314, %v1268
  %v1316 = vadd.f32 %v1315, %v1272
  %v1317 = vadd.f32 %v1316, %v1276
  %v1318 = vadd.f32 %v1317, %v1280
  %v1319 = vrot.slane %v1318, 4
  %v1320 = vadd.f32 %v1318, %v1319
  %v1321 = vrot.slane %v1320, 2
  %v1322 = vadd.f32 %v1320, %v1321
  %v1323 = vrot.slane %v1322, 1
  %v1324 = vadd.f32 %v1322, %v1323
  %v1325 = vadd.f32 %v1221, %v1225
  %v1326 = vadd.f32 %v1325, %v1229
  %v1327 = vadd.f32 %v1326, %v1233
  %v1328 = vadd.f32 %v1327, %v1237
  %v1329 = vadd.f32 %v1328, %v1241
  %v1330 = vadd.f32 %v1329, %v1245
  %v1331 = vadd.f32 %v1330, %v1249
  %v1332 = vadd.f32 %v1331, %v1253
  %v1333 = vadd.f32 %v1332, %v1257
  %v1334 = vadd.f32 %v1333, %v1261
  %v1335 = vadd.f32 %v1334, %v1265
  %v1336 = vadd.f32 %v1335, %v1269
  %v1337 = vadd.f32 %v1336, %v1273
  %v1338 = vadd.f32 %v1337, %v1277
  %v1339 = vadd.f32 %v1338, %v1281
  %v1340 = vrot.slane %v1339, 4
  %v1341 = vadd.f32 %v1339, %v1340
  %v1342 = vrot.slane %v1341, 2
  %v1343 = vadd.f32 %v1341, %v1342
  %v1344 = vrot.slane %v1343, 1
  %v1345 = vadd.f32 %v1343, %v1344
  %v1346 = vadd.f32 %v1222, %v1226
  %v1347 = vadd.f32 %v1346, %v1230
  %v1348 = vadd.f32 %v1347, %v1234
  %v1349 = vadd.f32 %v1348, %v1238
  %v1350 = vadd.f32 %v1349, %v1242
  %v1351 = vadd.f32 %v1350, %v1246
  %v1352 = vadd.f32 %v1351, %v1250
  %v1353 = vadd.f32 %v1352, %v1254
  %v1354 = vadd.f32 %v1353, %v1258
  %v1355 = vadd.f32 %v1354, %v1262
  %v1356 = vadd.f32 %v1355, %v1266
  %v1357 = vadd.f32 %v1356, %v1270
  %v1358 = vadd.f32 %v1357, %v1274
  %v1359 = vadd.f32 %v1358, %v1278
  %v1360 = vadd.f32 %v1359, %v1282
  %v1361 = vrot.slane %v1360, 4
  %v1362 = vadd.f32 %v1360, %v1361
  %v1363 = vrot.slane %v1362, 2
  %v1364 = vadd.f32 %v1362, %v1363
  %v1365 = vrot.slane %v1364, 1
  %v1366 = vadd.f32 %v1364, %v1365
  %s1367 = sld [smem:[#allocation2]]
  %v1368 = vstv %s1367
  %v1369 = vadd.f32 %v1303, %v1368
  %v1370 = vadd.f32 %v1324, %v1368
  %v1371 = vadd.f32 %v1345, %v1368
  %v1372 = vadd.f32 %v1366, %v1368
  %v1377 = vrot.slane %v1370, 7
  %v1378 = vrot.slane %v1371, 6
  %v1379 = vrot.slane %v1372, 5
  %vm1380 = vcmask 1040384
  %v1381 = vsel %vm1380, %v1369, %v1377
  %vm1382 = vcmask 1042434
  %v1383 = vsel %vm1382, %v1378, %v1379
  %vm1384 = vcmask 1041408
  %v1385 = vsel %vm1384, %v1381, %v1383
  %v1387 = vlaneseq
  %vm1388 = vcmp.ge.s32.totalorder %v1387, 0
  %vm1389 = vcmp.lt.s32.totalorder %v1387, 512
  %vm1390 = vmand %vm1388, %vm1389
  %1391 = vst.msk [vmem:[%s5] sm:$0xf] %vm1390, %v1385
  // Predicated region
  $region22: #{critic_forward.1} parent=0 // pred_check
    _
  $region23: #{critic_forward.1} parent=0 // pred_check_branch
    %1393 = sbr.rel (0) target = $region25
  $region24: #{critic_forward.1} parent=0 // pred_region
    _
  $region25: #{critic_forward.1} parent=0 // pred_fallthru
    _
  // Predicated region
  $region26: #{critic_forward.1} parent=0 // pred_check
    _
  $region27: #{critic_forward.1} parent=0 // pred_check_branch
    %1395 = sbr.rel (0) target = $region29
  $region28: #{critic_forward.1} parent=0 // pred_region
    _
  $region29: #{critic_forward.1} parent=0 // pred_fallthru
    _

</llo_original>
